<compile_context>
chip_gen: v6e
topology: v6e:2x2x1
jax: 0.10.0
libtpu: 0.0.40
codegen_flags: <defaults>
</compile_context>

<pallas_src>
import numpy as np
import jax
import jax.numpy as jnp
from jax.experimental import pallas as pl
from jax.experimental.pallas import tpu as pltpu


# ----------------------------------------------------------------------------
# Single fused kernel: folded 1x1-conv chain + 3x3 avg-pool + relu + tanh - 3
# ----------------------------------------------------------------------------
def make_fused_kernel(N, C, H, W):
    HW = H * W

    def kernel(w_ref, b_ref, m_ref, x_ref, o_ref):
        # w_ref: VMEM (1, C, 1) f32   folded conv weights, pre-scaled by 1/9
        # b_ref: SMEM (1,)      f32   folded bias, pre-scaled by 1/9
        # m_ref: VMEM (4, HW)   f32   {0,1} border masks [left, right, up, down]
        # x_ref: VMEM (N, C, HW) f32  input, spatial axis on lanes
        # o_ref: VMEM (N, HW)    f32  lane-dense output
        x = x_ref[...]                                   # (N, C, HW)
        w = w_ref[...]                                   # (1, C, 1)

        # ---- folded 1x1-conv chain (already includes /9): broadcast-mul +
        #      channel reduce (sublane reduce -> XLU), plus scalar bias ------
        y = jnp.sum(x * w, axis=1) + b_ref[0]            # (N, HW)

        # ---- separable 3x3 sum, stride 1, zero pad (count_include_pad) -----
        # flattened index: idx = h*W + w ; neighbors are lane rotations of
        # +1 / HW-1 (horizontal) and +W / HW-W (vertical), border-masked.
        m = m_ref[...]                                   # (4, HW)
        left = pltpu.roll(y, shift=1, axis=1) * m[0:1, :]
        right = pltpu.roll(y, shift=HW - 1, axis=1) * m[1:2, :]
        hsum = y + left + right                          # horizontal 3-tap

        up = pltpu.roll(hsum, shift=W, axis=1) * m[2:3, :]
        down = pltpu.roll(hsum, shift=HW - W, axis=1) * m[3:4, :]
        s = hsum + up + down                             # pooled average

        r = jnp.maximum(s, 0.0)                          # relu
        o_ref[...] = jnp.tanh(r) - 3.0                   # tanh (EUP), then t7

    return kernel


def fused_conv_pool(x_ncp, w_eff, b_eff, masks, H, W):
    N, C, HW = x_ncp.shape
    return pl.pallas_call(
        make_fused_kernel(N, C, H, W),
        out_shape=jax.ShapeDtypeStruct((N, HW), jnp.float32),
        grid=(),                            # tiny problem: single invocation
        in_specs=[
            pl.BlockSpec((1, C, 1), lambda: (0, 0, 0)),              # w_eff
            pl.BlockSpec(memory_space=pltpu.MemorySpace.SMEM),       # b_eff
            pl.BlockSpec((4, HW), lambda: (0, 0)),                   # masks
            pl.BlockSpec((N, C, HW), lambda: (0, 0, 0)),             # x
        ],
        out_specs=pl.BlockSpec((N, HW), lambda: (0, 0)),
    )(w_eff, b_eff, masks, x_ncp)


# ----------------------------------------------------------------------------
# Setup-time constants (computed ONCE, outside the jitted forward)
# ----------------------------------------------------------------------------
def init_params(key):
    k = jax.random.split(key, 6)
    # PyTorch conv weights are (out, in, 1, 1); stored here as (in, out).
    w1 = jax.random.normal(k[0], (4, 64), jnp.float32) * 0.1
    b1 = jax.random.normal(k[1], (1, 64), jnp.float32) * 0.1
    w2 = jax.random.normal(k[2], (64, 192), jnp.float32) * 0.05
    b2 = jax.random.normal(k[3], (1, 192), jnp.float32) * 0.05
    w3 = jax.random.normal(k[4], (192, 1), jnp.float32) * 0.05
    b3 = jax.random.normal(k[5], (1, 1), jnp.float32) * 0.05
    return w1, b1, w2, b2, w3, b3


def fold_params(w1, b1, w2, b2, w3, b3):
    # Exact because there is no nonlinearity between the 1x1 convs.
    # The 1/9 avg-pool scale commutes with the linear map, so fold it in too.
    C = w1.shape[0]
    w_eff = ((w1 @ w2 @ w3) / 9.0).reshape(1, C, 1).astype(jnp.float32)
    b_eff = (((b1 @ w2 + b2) @ w3 + b3) / 9.0).reshape(1).astype(jnp.float32)
    return w_eff, b_eff


def make_pool_masks(H, W):
    # {0,1} f32 masks for the four border-sensitive taps, on the flattened
    # H*W lane axis: [left (col>0), right (col<W-1), up (row>0), down (row<H-1)]
    idx = np.arange(H * W)
    col = idx % W
    row = idx // W
    masks = np.stack(
        [col > 0, col < W - 1, row > 0, row < H - 1]).astype(np.float32)
    return jnp.asarray(masks)                            # (4, H*W)


# ----------------------------------------------------------------------------
# Model wrapper (hot path: reshapes + one pallas_call, nothing else)
# ----------------------------------------------------------------------------
@jax.jit
def model_forward(x_nchw, w_eff, b_eff, masks):
    N, C, H, W = x_nchw.shape
    x_ncp = x_nchw.reshape(N, C, H * W)     # free reshape, no transpose
    t7 = fused_conv_pool(x_ncp, w_eff, b_eff, masks, H, W)   # (N, H*W)
    # t6 is (N,1,H,W); t7 = t6 - 3; t7.unsqueeze(-1) -> (N,1,H,W,1)
    return t7.reshape(N, 1, H, W, 1)


# Pure-JAX reference (un-folded, matches the torch forward op-for-op).
def reference_forward(x_nchw, w1, b1, w2, b2, w3, b3):
    N, C, H, W = x_nchw.shape
    xm = jnp.transpose(x_nchw, (0, 2, 3, 1)).reshape(N * H * W, C)
    h3 = ((xm @ w1 + b1) @ w2 + b2) @ w3 + b3
    t3 = h3.reshape(N, H, W)
    tp = jnp.pad(t3, ((0, 0), (1, 1), (1, 1)))
    s = sum(tp[:, i:i + H, j:j + W] for i in range(3) for j in range(3))
    t7 = jnp.tanh(jnp.maximum(s / 9.0, 0.0)) - 3.0
    return t7.reshape(N, 1, H, W, 1)


if __name__ == "__main__":
    key = jax.random.PRNGKey(0)
    kx, kp = jax.random.split(key)
    # Small shapes consistent with the module: N=2, C=4, H=W=16
    x = jax.random.normal(kx, (2, 4, 16, 16), jnp.float32)
    params = init_params(kp)

    # One-time setup outside the jitted hot path.
    w_eff, b_eff = fold_params(*params)
    masks = make_pool_masks(16, 16)

    out = model_forward(x, w_eff, b_eff, masks)
    jax.block_until_ready(out)

    assert out.shape == (2, 1, 16, 16, 1), out.shape
    assert out.dtype == jnp.float32

    ref = reference_forward(x, *params)
    err = float(jnp.max(jnp.abs(out - ref)))
    # Folding the conv chain (and the /9) reassociates fp32 math -> tiny tol.
    assert err < 3e-5, f"max abs error {err}"

    print("KERNEL_OK")
</pallas_src>

<mosaic_0001>
module attributes {stable_mosaic.version = 11 : i64} {
  func.func @kernel(%arg0: memref<1x4x1xf32, #tpu.memory_space<vmem>>, %arg1: memref<1xf32, #tpu.memory_space<smem>>, %arg2: memref<4x256xf32, #tpu.memory_space<vmem>>, %arg3: memref<2x4x256xf32, #tpu.memory_space<vmem>>, %arg4: memref<2x256xf32, #tpu.memory_space<vmem>>) attributes {dimension_semantics = [], scalar_prefetch = 0 : i64, scratch_operands = 0 : i64, tpu.core_type = #tpu.core_type<tc>} {
    %c0 = arith.constant 0 : index
    %c0_0 = arith.constant 0 : index
    %c0_1 = arith.constant 0 : index
    %0 = vector.load %arg3[%c0, %c0_0, %c0_1] : memref<2x4x256xf32, #tpu.memory_space<vmem>>, vector<2x4x256xf32>
    %c0_2 = arith.constant 0 : index
    %c0_3 = arith.constant 0 : index
    %c0_4 = arith.constant 0 : index
    %1 = vector.load %arg0[%c0_2, %c0_3, %c0_4] : memref<1x4x1xf32, #tpu.memory_space<vmem>>, vector<1x4x1xf32>
    %2 = vector.broadcast %1 : vector<1x4x1xf32> to vector<2x4x256xf32>
    %3 = arith.mulf %0, %2 : vector<2x4x256xf32>
    %cst = arith.constant dense<0.000000e+00> : vector<2x256xf32>
    %4 = vector.multi_reduction <add>, %3, %cst [1] : vector<2x4x256xf32> to vector<2x256xf32>
    %c0_5 = arith.constant 0 : index
    %5 = memref.load %arg1[%c0_5] : memref<1xf32, #tpu.memory_space<smem>>
    %6 = vector.broadcast %5 : f32 to vector<2x256xf32>
    %7 = arith.addf %4, %6 : vector<2x256xf32>
    %c0_6 = arith.constant 0 : index
    %c0_7 = arith.constant 0 : index
    %8 = vector.load %arg2[%c0_6, %c0_7] : memref<4x256xf32, #tpu.memory_space<vmem>>, vector<4x256xf32>
    %c1_i32 = arith.constant 1 : i32
    %9 = tpu.dynamic_rotate %7 by %c1_i32 dim 1 : vector<2x256xf32>, i32 -> vector<2x256xf32>
    %10 = vector.extract_strided_slice %8 {offsets = [0, 0], sizes = [1, 256], strides = [1, 1]} : vector<4x256xf32> to vector<1x256xf32>
    %11 = vector.broadcast %10 : vector<1x256xf32> to vector<2x256xf32>
    %12 = arith.mulf %9, %11 : vector<2x256xf32>
    %c255_i32 = arith.constant 255 : i32
    %13 = tpu.dynamic_rotate %7 by %c255_i32 dim 1 : vector<2x256xf32>, i32 -> vector<2x256xf32>
    %14 = vector.extract_strided_slice %8 {offsets = [1, 0], sizes = [1, 256], strides = [1, 1]} : vector<4x256xf32> to vector<1x256xf32>
    %15 = vector.broadcast %14 : vector<1x256xf32> to vector<2x256xf32>
    %16 = arith.mulf %13, %15 : vector<2x256xf32>
    %17 = arith.addf %7, %12 : vector<2x256xf32>
    %18 = arith.addf %17, %16 : vector<2x256xf32>
    %c16_i32 = arith.constant 16 : i32
    %19 = tpu.dynamic_rotate %18 by %c16_i32 dim 1 : vector<2x256xf32>, i32 -> vector<2x256xf32>
    %20 = vector.extract_strided_slice %8 {offsets = [2, 0], sizes = [1, 256], strides = [1, 1]} : vector<4x256xf32> to vector<1x256xf32>
    %21 = vector.broadcast %20 : vector<1x256xf32> to vector<2x256xf32>
    %22 = arith.mulf %19, %21 : vector<2x256xf32>
    %c240_i32 = arith.constant 240 : i32
    %23 = tpu.dynamic_rotate %18 by %c240_i32 dim 1 : vector<2x256xf32>, i32 -> vector<2x256xf32>
    %24 = vector.extract_strided_slice %8 {offsets = [3, 0], sizes = [1, 256], strides = [1, 1]} : vector<4x256xf32> to vector<1x256xf32>
    %25 = vector.broadcast %24 : vector<1x256xf32> to vector<2x256xf32>
    %26 = arith.mulf %23, %25 : vector<2x256xf32>
    %27 = arith.addf %18, %22 : vector<2x256xf32>
    %28 = arith.addf %27, %26 : vector<2x256xf32>
    %cst_8 = arith.constant 0.000000e+00 : f32
    %29 = vector.broadcast %cst_8 : f32 to vector<2x256xf32>
    %30 = arith.maximumf %28, %29 : vector<2x256xf32>
    %31 = math.tanh %30 : vector<2x256xf32>
    %cst_9 = arith.constant 3.000000e+00 : f32
    %32 = vector.broadcast %cst_9 : f32 to vector<2x256xf32>
    %33 = arith.subf %31, %32 : vector<2x256xf32>
    %c0_10 = arith.constant 0 : index
    %c0_11 = arith.constant 0 : index
    %34 = vector.load %arg4[%c0_10, %c0_11] : memref<2x256xf32, #tpu.memory_space<vmem>>, vector<2x256xf32>
    tpu.vector_store %arg4[%c0_10, %c0_11], %33 {strides = array<i32>} : memref<2x256xf32, #tpu.memory_space<vmem>>, vector<2x256xf32>,
    return
  }
}

</mosaic_0001>

<llo_original>
// kernel: model_forward.1
$region0: #{model_forward.1}
  #allocation0 [shape = 'u32[]', space=smem, size = 0x4, offset = 0x4, fixed_abs, tag = 'smem constant byte address 0x4 - core index']
  #allocation1 [shape = 'u32[144,128]{1,0:T(1,128)}', space=vmem, size = 0x12000, scoped, tag = 'internal scratch']
  #allocation2 [shape = 'f32[1]{0:T(128)S(6)}', space=smem, size = 0x200, scoped, tag = 'scoped memory for model_forward.1']
  %s0 = inlined_call_operand.vmem [shape: f32[1,4,1], index: 0, kind: input, shape index: {}]
  %s1 = inlined_call_operand.<no memory space> [shape: f32[1], index: 1, kind: input, shape index: {}]
  %s2 = inlined_call_operand.vmem [shape: f32[4,256], index: 2, kind: input, shape index: {}]
  %s3 = inlined_call_operand.vmem [shape: f32[2,4,256], index: 3, kind: input, shape index: {}]
  %s4 = inlined_call_operand.vmem [shape: f32[2,256], index: 4, kind: output, shape index: {}]
  %s5 = sld [smem:[#allocation0]]
  $region26: #{model_forward.1} parent=0
    _
  %s7 = ssub.s32 1, %s5
  %s8 = scalar_select 0, %s7, %s5
  %9 = sst [smem:[#allocation2]] %s1
  // Predicated region
  $region2: #{model_forward.1} parent=0 // pred_check
    _
  $region3: #{model_forward.1} parent=0 // pred_check_branch
    %11 = sbr.rel (0) target = $region5
  $region4: #{model_forward.1} parent=0 // pred_region
    _
  $region5: #{model_forward.1} parent=0 // pred_fallthru
    _
  // Predicated region
  $region6: #{model_forward.1} parent=0 // pred_check
    _
  $region7: #{model_forward.1} parent=0 // pred_check_branch
    %13 = sbr.rel (0) target = $region9
  $region8: #{model_forward.1} parent=0 // pred_region
    _
  $region9: #{model_forward.1} parent=0 // pred_fallthru
    _
  // Predicated region
  $region10: #{model_forward.1} parent=0 // pred_check
    _
  $region11: #{model_forward.1} parent=0 // pred_check_branch
    %15 = sbr.rel (0) target = $region13
  $region12: #{model_forward.1} parent=0 // pred_region
    _
  $region13: #{model_forward.1} parent=0 // pred_fallthru
    _
  // Predicated region
  $region14: #{model_forward.1} parent=0 // pred_check
    _
  $region15: #{model_forward.1} parent=0 // pred_check_branch
    %17 = sbr.rel (0) target = $region17
  $region16: #{model_forward.1} parent=0 // pred_region
    _
  $region17: #{model_forward.1} parent=0 // pred_fallthru
    _
  %v18 = vld [vmem:[%s3] sm:$0xff]
  %v19 = vld [vmem:[%s3 + $0x8] sm:$0xff]
  %v20 = vld [vmem:[%s0] sm:$0xf]
  %22 = vset.pattern.permute.xlu0 0
  %23 = vperm.xlu0 %22, %v20
  %v24 = vpop.permute.xlu0 %23
  %v26 = vunpack.c.l.s4 839922192
  %v27 = vunpack.c.0.s8 %v26
  %v28 = vlaneseq
  %v29 = vshrl.u32 %v28, 7
  %v30 = vsub.s32 %v27, %v29
  %v31 = vrot.slane %v24, %v30
  %v33 = vmul.f32 %v18, %v31
  %v34 = vmul.f32 %v19, %v31
  %v37 = vcombine.high %v33, %v33
  %v38 = vcombine.high %v34, %v34
  %vm41 = vcmask 1043456
  %v42 = vsel %vm41, %v33, 0.0
  %v43 = vrot.slane %v42, 4
  %v44 = vadd.f32 %v42, %v43
  %v45 = vrot.slane %v44, 2
  %v46 = vadd.f32 %v44, %v45
  %v47 = vrot.slane %v46, 1
  %v48 = vadd.f32 %v46, %v47
  %v49 = vsel %vm41, %v37, 0.0
  %v50 = vrot.slane %v49, 4
  %v51 = vadd.f32 %v49, %v50
  %v52 = vrot.slane %v51, 2
  %v53 = vadd.f32 %v51, %v52
  %v54 = vrot.slane %v53, 1
  %v55 = vadd.f32 %v53, %v54
  %v56 = vsel %vm41, %v34, 0.0
  %v57 = vrot.slane %v56, 4
  %v58 = vadd.f32 %v56, %v57
  %v59 = vrot.slane %v58, 2
  %v60 = vadd.f32 %v58, %v59
  %v61 = vrot.slane %v60, 1
  %v62 = vadd.f32 %v60, %v61
  %v63 = vsel %vm41, %v38, 0.0
  %v64 = vrot.slane %v63, 4
  %v65 = vadd.f32 %v63, %v64
  %v66 = vrot.slane %v65, 2
  %v67 = vadd.f32 %v65, %v66
  %v68 = vrot.slane %v67, 1
  %v69 = vadd.f32 %v67, %v68
  %s70 = sld [smem:[#allocation2]]
  %v71 = vstv %s70
  %v72 = vadd.f32 %v48, %v71
  %v73 = vadd.f32 %v55, %v71
  %v74 = vadd.f32 %v62, %v71
  %v75 = vadd.f32 %v69, %v71
  %v76 = vld [vmem:[%s2] sm:$0xff]
  %vm81 = vcmask 1041409
  %v82 = vsel %vm81, %v74, %v72
  %v83 = vsel %vm81, %v75, %v73
  %86 = vrot.lane.b32.xlu0 %v82, 1
  %v87 = vpop.permute.xlu0 %86
  %88 = vrot.lane.b32.xlu0 %v83, 1
  %v89 = vpop.permute.xlu0 %88
  %v90 = vlaneseq
  %v91 = vand.u32 %v90, 127
  %vm92 = vcmp.lt.s32.totalorder %v91, 1
  %v93 = vsel %vm92, %v87, %v89
  %v94 = vsel %vm92, %v89, %v87
  %v96 = vlaneseq
  %v97 = vshrl.u32 %v96, 7
  %v98 = vsub.s32 0, %v97
  %v99 = vrot.slane %v76, %v98
  %v100 = vlaneseq
  %v101 = vshrl.u32 %v100, 7
  %v102 = vsub.s32 4, %v101
  %v103 = vrot.slane %v76, %v102
  %v106 = vlaneseq
  %v107 = vshrl.u32 %v106, 7
  %v108 = vsub.s32 0, %v107
  %v109 = vrot.slane %v99, %v108
  %v110 = vlaneseq
  %v111 = vshrl.u32 %v110, 7
  %v112 = vsub.s32 0, %v111
  %v113 = vrot.slane %v103, %v112
  %v114 = vmul.f32 %v94, %v109
  %v115 = vmul.f32 %v93, %v113
  %116 = vrot.lane.b32.xlu0 %v82, 127
  %v117 = vpop.permute.xlu0 %116
  %118 = vrot.lane.b32.xlu0 %v83, 127
  %v119 = vpop.permute.xlu0 %118
  %vm120 = vcmp.lt.s32.totalorder %v91, 127
  %v121 = vsel %vm120, %v117, %v119
  %v122 = vsel %vm120, %v119, %v117
  %v123 = vlaneseq
  %v124 = vshrl.u32 %v123, 7
  %v125 = vsub.s32 1, %v124
  %v126 = vrot.slane %v76, %v125
  %v127 = vlaneseq
  %v128 = vshrl.u32 %v127, 7
  %v129 = vsub.s32 5, %v128
  %v130 = vrot.slane %v76, %v129
  %v133 = vlaneseq
  %v134 = vshrl.u32 %v133, 7
  %v135 = vsub.s32 1, %v134
  %v136 = vrot.slane %v126, %v135
  %v137 = vlaneseq
  %v138 = vshrl.u32 %v137, 7
  %v139 = vsub.s32 1, %v138
  %v140 = vrot.slane %v130, %v139
  %v141 = vmul.f32 %v121, %v136
  %v142 = vmul.f32 %v122, %v140
  %v145 = vrot.slane %v114, 1
  %v146 = vrot.slane %v115, 1
  %v151 = vadd.f32 %v72, %v114
  %v152 = vadd.f32 %v73, %v115
  %v153 = vadd.f32 %v74, %v145
  %v154 = vadd.f32 %v75, %v146
  %v157 = vrot.slane %v141, 1
  %v158 = vrot.slane %v142, 1
  %v163 = vadd.f32 %v151, %v141
  %v164 = vadd.f32 %v152, %v142
  %v165 = vadd.f32 %v153, %v157
  %v166 = vadd.f32 %v154, %v158
  %v171 = vrot.slane %v165, 7
  %v172 = vsel %vm81, %v171, %v163
  %v173 = vrot.slane %v166, 7
  %v174 = vsel %vm81, %v173, %v164
  %177 = vrot.lane.b32.xlu0 %v172, 16
  %v178 = vpop.permute.xlu0 %177
  %179 = vrot.lane.b32.xlu0 %v174, 16
  %v180 = vpop.permute.xlu0 %179
  %vm181 = vcmp.lt.s32.totalorder %v91, 16
  %v182 = vsel %vm181, %v178, %v180
  %v183 = vsel %vm181, %v180, %v178
  %v184 = vlaneseq
  %v185 = vshrl.u32 %v184, 7
  %v186 = vsub.s32 2, %v185
  %v187 = vrot.slane %v76, %v186
  %v188 = vlaneseq
  %v189 = vshrl.u32 %v188, 7
  %v190 = vsub.s32 6, %v189
  %v191 = vrot.slane %v76, %v190
  %v194 = vlaneseq
  %v195 = vshrl.u32 %v194, 7
  %v196 = vsub.s32 2, %v195
  %v197 = vrot.slane %v187, %v196
  %v198 = vlaneseq
  %v199 = vshrl.u32 %v198, 7
  %v200 = vsub.s32 2, %v199
  %v201 = vrot.slane %v191, %v200
  %v202 = vmul.f32 %v183, %v197
  %v203 = vmul.f32 %v182, %v201
  %204 = vrot.lane.b32.xlu0 %v172, 112
  %v205 = vpop.permute.xlu0 %204
  %206 = vrot.lane.b32.xlu0 %v174, 112
  %v207 = vpop.permute.xlu0 %206
  %vm208 = vcmp.lt.s32.totalorder %v91, 112
  %v209 = vsel %vm208, %v205, %v207
  %v210 = vsel %vm208, %v207, %v205
  %v211 = vlaneseq
  %v212 = vshrl.u32 %v211, 7
  %v213 = vsub.s32 3, %v212
  %v214 = vrot.slane %v76, %v213
  %v215 = vlaneseq
  %v216 = vshrl.u32 %v215, 7
  %v217 = vsub.s32 7, %v216
  %v218 = vrot.slane %v76, %v217
  %v221 = vlaneseq
  %v222 = vshrl.u32 %v221, 7
  %v223 = vsub.s32 3, %v222
  %v224 = vrot.slane %v214, %v223
  %v225 = vlaneseq
  %v226 = vshrl.u32 %v225, 7
  %v227 = vsub.s32 3, %v226
  %v228 = vrot.slane %v218, %v227
  %v229 = vmul.f32 %v209, %v224
  %v230 = vmul.f32 %v210, %v228
  %v233 = vrot.slane %v202, 1
  %v234 = vrot.slane %v203, 1
  %v239 = vadd.f32 %v163, %v202
  %v240 = vadd.f32 %v164, %v203
  %v241 = vadd.f32 %v165, %v233
  %v242 = vadd.f32 %v166, %v234
  %v245 = vrot.slane %v229, 1
  %v246 = vrot.slane %v230, 1
  %v251 = vadd.f32 %v239, %v229
  %v252 = vadd.f32 %v240, %v230
  %v253 = vadd.f32 %v241, %v245
  %v254 = vadd.f32 %v242, %v246
  %v255 = vmax.f32 %v251, 0.0
  %v256 = vmax.f32 %v252, 0.0
  %v257 = vmax.f32 %v253, 0.0
  %v258 = vmax.f32 %v254, 0.0
  %v259 = vtanh.pop %v255
  %v260 = vtanh.pop %v256
  %v261 = vtanh.pop %v257
  %v262 = vtanh.pop %v258
  %v263 = vsub.f32 %v259, 3.0
  %v264 = vsub.f32 %v260, 3.0
  %v265 = vsub.f32 %v261, 3.0
  %v266 = vsub.f32 %v262, 3.0
  %v271 = vcombine.low %v263, %v264
  %v273 = vunpack.c.l.s4 1983009808
  %v274 = vunpack.c.0.s8 %v273
  %v275 = vlaneseq
  %v276 = vshrl.u32 %v275, 7
  %v277 = vsub.s32 %v274, %v276
  %v278 = vrot.slane %v271, %v277
  %v279 = vcombine.low %v265, %v266
  %v281 = vunpack.c.l.s4 1983009808
  %v282 = vunpack.c.0.s8 %v281
  %v283 = vlaneseq
  %v284 = vshrl.u32 %v283, 7
  %v285 = vsub.s32 %v282, %v284
  %v286 = vrot.slane %v279, %v285
  %vm287 = vcmask 1044484
  %v288 = vsel %vm287, %v278, %v278
  %vm289 = vcmask 1046534
  %v290 = vsel %vm289, %v278, %v288
  %v291 = vrot.slane %v286, 7
  %v292 = vsel %vm81, %v291, %v290
  %vm293 = vcmask 1043459
  %v294 = vsel %vm293, %v291, %v292
  %vm295 = vcmask 1045509
  %v296 = vsel %vm295, %v291, %v294
  %vm297 = vcmask 1047559
  %v298 = vsel %vm297, %v291, %v296
  %300 = vst [vmem:[%s4] sm:$0xf] %v298
  // Predicated region
  $region18: #{model_forward.1} parent=0 // pred_check
    _
  $region19: #{model_forward.1} parent=0 // pred_check_branch
    %302 = sbr.rel (0) target = $region21
  $region20: #{model_forward.1} parent=0 // pred_region
    _
  $region21: #{model_forward.1} parent=0 // pred_fallthru
    _
  // Predicated region
  $region22: #{model_forward.1} parent=0 // pred_check
    _
  $region23: #{model_forward.1} parent=0 // pred_check_branch
    %304 = sbr.rel (0) target = $region25
  $region24: #{model_forward.1} parent=0 // pred_region
    _
  $region25: #{model_forward.1} parent=0 // pred_fallthru
    _

</llo_original>
